<compile_context>
chip_gen: v7x
topology: tpu7x:2x2x1
jax: 0.10.0
libtpu: 0.0.40
codegen_flags: <defaults>
</compile_context>

<pallas_src>
import functools
import math

import jax
import jax.numpy as jnp
from jax.experimental import pallas as pl
from jax.experimental.pallas import tpu as pltpu


def _round_up(x, m):
    return (x + m - 1) // m * m


def _lipschitz_linear_kernel(x_ref, w_ref, b_ref, c_ref, o_ref,
                             acc_ref, rowsum_ref, *, matmul_dtype):
    """Grid = (M/tm, N/tn, K/tk); K is the innermost ("arbitrary") reduction axis.

    x_ref: (tm, tk)  w_ref: (tn, tk)  b_ref: (1, tn)  c_ref: (1, 1)  o_ref: (tm, tn)
    acc_ref: (tm, tn) f32 scratch     rowsum_ref: (1, tn) f32 scratch
    """
    k = pl.program_id(2)

    @pl.when(k == 0)
    def _init():
        acc_ref[...] = jnp.zeros_like(acc_ref)
        rowsum_ref[...] = jnp.zeros_like(rowsum_ref)

    x = x_ref[...]                                   # (tm, tk) f32
    w = w_ref[...]                                   # (tn, tk) f32

    # Partial matmul, contracting K of both operands (no .T -> no XLU transpose).
    # Optionally cast inputs to bf16 for MXU throughput; accumulate in f32.
    acc_ref[...] += jax.lax.dot_general(
        x.astype(matmul_dtype), w.astype(matmul_dtype),
        dimension_numbers=(((1,), (1,)), ((), ())),
        preferred_element_type=jnp.float32)

    # Partial |W| row sums, fused into the same single pass over W.
    # ones(1,tk) contracted with |W|(tn,tk) lands the sums directly in the
    # lane-aligned (1, tn) layout of the output columns. Kept in f32.
    ones_row = jnp.ones((1, w_ref.shape[1]), dtype=jnp.float32)
    rowsum_ref[...] += jax.lax.dot_general(
        ones_row, jnp.abs(w),
        dimension_numbers=(((1,), (1,)), ((), ())),
        preferred_element_type=jnp.float32)

    # Finalize once per output tile: softplus(c), clamp the per-row scale,
    # apply it to the output tile (B*N muls instead of N*K), add bias.
    @pl.when(k == pl.num_programs(2) - 1)
    def _finalize():
        c = c_ref[...]                                           # (1, 1) f32
        # softplus with torch's threshold=20 semantics.
        lipc = jnp.where(c > 20.0, c, jnp.log(1.0 + jnp.exp(c)))
        # Guard all-zero (padded) rows against 0-division.
        rowsum = jnp.maximum(rowsum_ref[...], 1e-30)             # (1, tn)
        # Exact divide on purpose: it runs once per output tile at finalize
        # (not per K step), so pl.reciprocal(approx=True) would save nothing
        # measurable while loosening parity with the reference.
        scale = jnp.minimum(lipc / rowsum, 1.0)                  # clamp(max=1.0)
        o_ref[...] = (acc_ref[...] * scale + b_ref[...]).astype(o_ref.dtype)


def lipschitz_linear(x, weight, bias, c, *,
                     block_m=256, block_n=256, block_k=256,
                     matmul_dtype=jnp.float32):
    """LipschitzLinear forward.

    x: (B, K) f32, weight: (N, K) f32, bias: (N,) f32, c: scalar f32.
    Returns (B, N) f32.
    """
    B, K = x.shape
    N, K2 = weight.shape
    assert K == K2 and bias.shape == (N,)

    # Lane/sublane + MXU friendly tiles; output padded to multiples of 128
    # so stores are lane-dense (no masked vst.msk partial stores).
    tm = min(block_m, _round_up(B, 8))
    tn = min(block_n, _round_up(N, 128))
    tk = min(block_k, _round_up(K, 128))
    Mp = _round_up(B, tm)
    Np = _round_up(N, tn)
    Kp = _round_up(K, tk)

    x_p = jnp.pad(x.astype(jnp.float32), ((0, Mp - B), (0, Kp - K)))
    w_p = jnp.pad(weight.astype(jnp.float32), ((0, Np - N), (0, Kp - K)))
    b_p = jnp.pad(bias.astype(jnp.float32), (0, Np - N)).reshape(1, Np)
    c_p = jnp.reshape(c, (1, 1)).astype(jnp.float32)

    grid = (Mp // tm, Np // tn, Kp // tk)

    # VMEM budget: double-buffered x/W/bias/out blocks + accumulator/row-sum
    # scratch, with headroom; capped at 48 MiB (safe on v7x's 64 MiB physical).
    block_bytes = 4 * (tm * tk + tn * tk + tn + 1 + tm * tn)
    scratch_bytes = 4 * (tm * tn + tn)
    vmem_limit = int(min(48 * 1024 * 1024,
                         max(16 * 1024 * 1024, 6 * block_bytes + 2 * scratch_bytes)))

    kernel = functools.partial(_lipschitz_linear_kernel, matmul_dtype=matmul_dtype)

    out_p = pl.pallas_call(
        kernel,
        out_shape=jax.ShapeDtypeStruct((Mp, Np), jnp.float32),
        grid_spec=pltpu.PrefetchScalarGridSpec(
            num_scalar_prefetch=0,
            grid=grid,
            in_specs=[
                pl.BlockSpec((tm, tk), lambda i, j, k: (i, k)),  # x
                pl.BlockSpec((tn, tk), lambda i, j, k: (j, k)),  # W, natural (N, K) layout
                pl.BlockSpec((1, tn), lambda i, j, k: (0, j)),   # bias
                pl.BlockSpec((1, 1), lambda i, j, k: (0, 0)),    # c (scalar)
            ],
            out_specs=pl.BlockSpec((tm, tn), lambda i, j, k: (i, j)),
            scratch_shapes=[
                pltpu.VMEM((tm, tn), jnp.float32),   # matmul accumulator
                pltpu.VMEM((1, tn), jnp.float32),    # |W| row-sum accumulator
            ],
        ),
        compiler_params=pltpu.CompilerParams(
            dimension_semantics=("parallel", "parallel", "arbitrary"),
            vmem_limit_bytes=vmem_limit,
        ),
    )(x_p, w_p, b_p, c_p)

    return out_p[:B, :N]


def init_lipschitz_linear_params(key, in_features, out_features, zero=False):
    """Deterministic re-implementation of LipschitzLinear.initialize_parameters."""
    stdv = 1.0 / math.sqrt(in_features)
    k_w, k_b = jax.random.split(key)
    if zero:
        weight = jnp.full((out_features, in_features), 1e-6, dtype=jnp.float32)
        bias = jnp.zeros((out_features,), dtype=jnp.float32)
    else:
        weight = jax.random.uniform(
            k_w, (out_features, in_features), jnp.float32, minval=-stdv, maxval=stdv)
        bias = jax.random.uniform(
            k_b, (out_features,), jnp.float32, minval=-stdv, maxval=stdv)
    c = jnp.max(jnp.sum(jnp.abs(weight), axis=1))  # scalar
    return weight, bias, c


def _reference(x, weight, bias, c):
    """Module-faithful reference: scale the weights, then linear."""
    lipc = jnp.where(c > 20.0, c, jnp.log1p(jnp.exp(c)))
    scale = jnp.minimum(lipc / jnp.sum(jnp.abs(weight), axis=1), 1.0)  # clamp(max=1.0)
    w_scaled = weight * scale[:, None]
    y = jax.lax.dot_general(
        x, w_scaled, dimension_numbers=(((1,), (1,)), ((), ())),
        precision=jax.lax.Precision.HIGHEST)
    return y + bias[None, :]


if __name__ == "__main__":
    key = jax.random.PRNGKey(0)
    k_params, k_x, k_params2, k_x2 = jax.random.split(key, 4)

    # 1) Small shape matching typical camtrans usage (single grid step).
    batch, in_features, out_features = 8, 32, 16
    weight, bias, c = init_lipschitz_linear_params(
        k_params, in_features, out_features, zero=False)
    x = jax.random.normal(k_x, (batch, in_features), dtype=jnp.float32)

    out = lipschitz_linear(x, weight, bias, c)
    out = jax.block_until_ready(out)
    ref = _reference(x, weight, bias, c)
    assert out.shape == (batch, out_features)
    assert jnp.allclose(out, ref, atol=1e-4, rtol=1e-4), "mismatch vs reference (small)"

    # 2) Non-aligned shape with small blocks to exercise the (M, N, K) grid,
    #    K-accumulation and the fused row-sum path (grid = (3, 3, 3)).
    b2, k2, n2 = 24, 384, 272
    weight2, bias2, c2 = init_lipschitz_linear_params(k_params2, k2, n2, zero=False)
    x2 = jax.random.normal(k_x2, (b2, k2), dtype=jnp.float32)

    out2 = lipschitz_linear(x2, weight2, bias2, c2,
                            block_m=8, block_n=128, block_k=128)
    out2 = jax.block_until_ready(out2)
    ref2 = _reference(x2, weight2, bias2, c2)
    assert out2.shape == (b2, n2)
    assert jnp.allclose(out2, ref2, atol=1e-4, rtol=1e-4), "mismatch vs reference (tiled)"

    print("KERNEL_OK")
</pallas_src>

<mosaic_0001>
module attributes {stable_mosaic.version = 11 : i64} {
  func.func @_lipschitz_linear_kernel(%arg0: i32, %arg1: i32, %arg2: i32, %arg3: memref<8x128xf32, #tpu.memory_space<vmem>>, %arg4: memref<128x128xf32, #tpu.memory_space<vmem>>, %arg5: memref<1x128xf32, #tpu.memory_space<vmem>>, %arg6: memref<1x1xf32, #tpu.memory_space<vmem>>, %arg7: memref<8x128xf32, #tpu.memory_space<vmem>>, %arg8: memref<8x128xf32, #tpu.memory_space<vmem>>, %arg9: memref<1x128xf32, #tpu.memory_space<vmem>>) attributes {dimension_semantics = [#tpu.dimension_semantics<parallel>, #tpu.dimension_semantics<parallel>, #tpu.dimension_semantics<arbitrary>], iteration_bounds = array<i64: 1, 1, 1>, scalar_prefetch = 0 : i64, scratch_operands = 2 : i64, tpu.core_type = #tpu.core_type<tc>, window_params = [{transform_indices = @transform_0, window_bounds = array<i64: 8, 128>}, {transform_indices = @transform_1, window_bounds = array<i64: 128, 128>}, {transform_indices = @transform_2, window_bounds = array<i64: 1, 128>}, {pipeline_mode = #tpu.pipeline_mode<synchronous>, transform_indices = @transform_3, window_bounds = array<i64: 1, 1>}, {transform_indices = @transform_4, window_bounds = array<i64: 8, 128>}]} {
    %c0_i32 = arith.constant 0 : i32
    %0 = arith.cmpi eq, %arg2, %c0_i32 : i32
    %1 = arith.extui %0 : i1 to i32
    %c0_i32_0 = arith.constant 0 : i32
    %2 = arith.cmpi ne, %1, %c0_i32_0 : i32
    scf.if %2 {
      %cst_16 = arith.constant 0.000000e+00 : f32
      %18 = vector.broadcast %cst_16 : f32 to vector<8x128xf32>
      %c0_17 = arith.constant 0 : index
      %c0_18 = arith.constant 0 : index
      %19 = vector.load %arg8[%c0_17, %c0_18] : memref<8x128xf32, #tpu.memory_space<vmem>>, vector<8x128xf32>
      tpu.vector_store %arg8[%c0_17, %c0_18], %18 {strides = array<i32>} : memref<8x128xf32, #tpu.memory_space<vmem>>, vector<8x128xf32>,
      %cst_19 = arith.constant 0.000000e+00 : f32
      %20 = vector.broadcast %cst_19 : f32 to vector<1x128xf32>
      %c0_20 = arith.constant 0 : index
      %c0_21 = arith.constant 0 : index
      %21 = vector.load %arg9[%c0_20, %c0_21] : memref<1x128xf32, #tpu.memory_space<vmem>>, vector<1x128xf32>
      tpu.vector_store %arg9[%c0_20, %c0_21], %20 {strides = array<i32>} : memref<1x128xf32, #tpu.memory_space<vmem>>, vector<1x128xf32>,
    } else {
    }
    %c0 = arith.constant 0 : index
    %c0_1 = arith.constant 0 : index
    %3 = vector.load %arg3[%c0, %c0_1] : memref<8x128xf32, #tpu.memory_space<vmem>>, vector<8x128xf32>
    %c0_2 = arith.constant 0 : index
    %c0_3 = arith.constant 0 : index
    %4 = vector.load %arg4[%c0_2, %c0_3] : memref<128x128xf32, #tpu.memory_space<vmem>>, vector<128x128xf32>
    %c0_4 = arith.constant 0 : index
    %c0_5 = arith.constant 0 : index
    %5 = vector.load %arg8[%c0_4, %c0_5] : memref<8x128xf32, #tpu.memory_space<vmem>>, vector<8x128xf32>
    %cst = arith.constant dense<0.000000e+00> : vector<8x128xf32>
    %6 = tpu.matmul %3, %4, %cst {dimension_numbers = #tpu.dot_dimension_numbers<[1], [1], [0], [0], [0, 0, 1, 0], [], []>} : vector<8x128xf32>, vector<128x128xf32>, vector<8x128xf32> -> vector<8x128xf32>
    %7 = arith.addf %5, %6 : vector<8x128xf32>
    %c0_6 = arith.constant 0 : index
    %c0_7 = arith.constant 0 : index
    %8 = vector.load %arg8[%c0_6, %c0_7] : memref<8x128xf32, #tpu.memory_space<vmem>>, vector<8x128xf32>
    tpu.vector_store %arg8[%c0_6, %c0_7], %7 {strides = array<i32>} : memref<8x128xf32, #tpu.memory_space<vmem>>, vector<8x128xf32>,
    %cst_8 = arith.constant 1.000000e+00 : f32
    %9 = vector.broadcast %cst_8 : f32 to vector<1x128xf32>
    %c0_9 = arith.constant 0 : index
    %c0_10 = arith.constant 0 : index
    %10 = vector.load %arg9[%c0_9, %c0_10] : memref<1x128xf32, #tpu.memory_space<vmem>>, vector<1x128xf32>
    %11 = math.absf %4 : vector<128x128xf32>
    %cst_11 = arith.constant dense<0.000000e+00> : vector<1x128xf32>
    %12 = tpu.matmul %9, %11, %cst_11 {dimension_numbers = #tpu.dot_dimension_numbers<[1], [1], [0], [0], [0, 0, 1, 0], [], []>} : vector<1x128xf32>, vector<128x128xf32>, vector<1x128xf32> -> vector<1x128xf32>
    %13 = arith.addf %10, %12 : vector<1x128xf32>
    %c0_12 = arith.constant 0 : index
    %c0_13 = arith.constant 0 : index
    %14 = vector.load %arg9[%c0_12, %c0_13] : memref<1x128xf32, #tpu.memory_space<vmem>>, vector<1x128xf32>
    tpu.vector_store %arg9[%c0_12, %c0_13], %13 {strides = array<i32>} : memref<1x128xf32, #tpu.memory_space<vmem>>, vector<1x128xf32>,
    %c0_i32_14 = arith.constant 0 : i32
    %15 = arith.cmpi eq, %arg2, %c0_i32_14 : i32
    %16 = arith.extui %15 : i1 to i32
    %c0_i32_15 = arith.constant 0 : i32
    %17 = arith.cmpi ne, %16, %c0_i32_15 : i32
    scf.if %17 {
      %c0_16 = arith.constant 0 : index
      %c0_17 = arith.constant 0 : index
      %18 = vector.load %arg6[%c0_16, %c0_17] : memref<1x1xf32, #tpu.memory_space<vmem>>, vector<1x1xf32>
      %cst_18 = arith.constant 2.000000e+01 : f32
      %19 = vector.broadcast %cst_18 : f32 to vector<1x1xf32>
      %20 = arith.cmpf ogt, %18, %19 : vector<1x1xf32>
      %21 = math.exp %18 : vector<1x1xf32>
      %cst_19 = arith.constant 1.000000e+00 : f32
      %22 = vector.broadcast %cst_19 : f32 to vector<1x1xf32>
      %23 = arith.addf %22, %21 : vector<1x1xf32>
      %24 = math.log %23 : vector<1x1xf32>
      %25 = arith.select %20, %18, %24 : vector<1x1xi1>, vector<1x1xf32>
      %c0_20 = arith.constant 0 : index
      %c0_21 = arith.constant 0 : index
      %26 = vector.load %arg9[%c0_20, %c0_21] : memref<1x128xf32, #tpu.memory_space<vmem>>, vector<1x128xf32>
      %cst_22 = arith.constant 1.000000e-30 : f32
      %27 = vector.broadcast %cst_22 : f32 to vector<1x128xf32>
      %28 = arith.maximumf %26, %27 : vector<1x128xf32>
      %29 = vector.broadcast %25 : vector<1x1xf32> to vector<1x128xf32>
      %30 = arith.divf %29, %28 : vector<1x128xf32>
      %cst_23 = arith.constant 1.000000e+00 : f32
      %31 = vector.broadcast %cst_23 : f32 to vector<1x128xf32>
      %32 = arith.minimumf %30, %31 : vector<1x128xf32>
      %c0_24 = arith.constant 0 : index
      %c0_25 = arith.constant 0 : index
      %33 = vector.load %arg8[%c0_24, %c0_25] : memref<8x128xf32, #tpu.memory_space<vmem>>, vector<8x128xf32>
      %34 = vector.broadcast %32 : vector<1x128xf32> to vector<8x128xf32>
      %35 = arith.mulf %33, %34 : vector<8x128xf32>
      %c0_26 = arith.constant 0 : index
      %c0_27 = arith.constant 0 : index
      %36 = vector.load %arg5[%c0_26, %c0_27] : memref<1x128xf32, #tpu.memory_space<vmem>>, vector<1x128xf32>
      %37 = vector.broadcast %36 : vector<1x128xf32> to vector<8x128xf32>
      %38 = arith.addf %35, %37 : vector<8x128xf32>
      %c0_28 = arith.constant 0 : index
      %c0_29 = arith.constant 0 : index
      %39 = vector.load %arg7[%c0_28, %c0_29] : memref<8x128xf32, #tpu.memory_space<vmem>>, vector<8x128xf32>
      tpu.vector_store %arg7[%c0_28, %c0_29], %38 {strides = array<i32>} : memref<8x128xf32, #tpu.memory_space<vmem>>, vector<8x128xf32>,
    } else {
    }
    return
  }
  func.func @transform_0(%arg0: i32, %arg1: i32, %arg2: i32) -> (i32, i32) {
    %c0_i32 = arith.constant 0 : i32
    return %arg0, %arg2 : i32, i32
  }
  func.func @transform_1(%arg0: i32, %arg1: i32, %arg2: i32) -> (i32, i32) {
    %c0_i32 = arith.constant 0 : i32
    return %arg1, %arg2 : i32, i32
  }
  func.func @transform_2(%arg0: i32, %arg1: i32, %arg2: i32) -> (i32, i32) {
    %c0_i32 = arith.constant 0 : i32
    %c0_i32_0 = arith.constant 0 : i32
    return %c0_i32, %arg1 : i32, i32
  }
  func.func @transform_3(%arg0: i32, %arg1: i32, %arg2: i32) -> (i32, i32) {
    %c0_i32 = arith.constant 0 : i32
    %c0_i32_0 = arith.constant 0 : i32
    %c0_i32_1 = arith.constant 0 : i32
    return %c0_i32, %c0_i32_0 : i32, i32
  }
  func.func @transform_4(%arg0: i32, %arg1: i32, %arg2: i32) -> (i32, i32) {
    %c0_i32 = arith.constant 0 : i32
    return %arg0, %arg1 : i32, i32
  }
}

</mosaic_0001>

<llo_original>
// kernel: tpu_custom_call.1
$region0: #{tpu_custom_call.1}
  #allocation0 [shape = 'u32[]', space=smem, size = 0x4, offset = 0x4, fixed_abs, tag = 'smem constant byte address 0x4 - core index']
  #allocation1 [shape = 'u32[144,128]{1,0:T(1,128)}', space=vmem, size = 0x12000, scoped, tag = 'internal scratch']
  #allocation2 [shape = 'f32[8,128]{1,0:T(8,128)}', space=vmem, size = 0x1000, scoped, tag = 'scratch operand']
  #allocation3 [shape = 'f32[1,128]{1,0:T(1,128)}', space=vmem, size = 0x200, scoped, tag = 'scratch operand']
  #allocation4 [shape = 'f32[1,1]{1,0:T(1,128)S(1)}', space=vmem, size = 0x200, scoped, tag = 'scoped memory for tpu_custom_call.1']
  %s0 = inlined_call_operand.hbm [shape: f32[8,128], index: 0, kind: input, shape index: {}]
  %s1 = inlined_call_operand.hbm [shape: f32[128,128], index: 1, kind: input, shape index: {}]
  %s2 = inlined_call_operand.vmem [shape: f32[1,128], index: 2, kind: input, shape index: {}]
  %s3 = inlined_call_operand.<no memory space> [shape: f32[1,1], index: 3, kind: input, shape index: {}]
  %s4 = inlined_call_operand.hbm [shape: f32[8,128], index: 4, kind: output, shape index: {}]
  %s5 = sld [smem:[#allocation0]]
  $region42: #{tpu_custom_call.1} parent=0
    _
  %s7 = ssub.s32 1, %s5
  %s8 = scalar_select 0, %s7, %s5
  %v9 = vstv %s3
  %10 = vst [vmem:[#allocation4] sm:$0x1] %v9
  $region1: #{tpu_custom_call.1} parent=0
    #allocation5 [shape = 'u8[4096]{0}', space=vmem, size = 0x1000, scoped, tag = 'input window, operand 0, single buffered']
    #allocation6 [shape = 's32[1]{0}', space=sflag, size = 0x4, scoped, tag = 'scoped memory for tpu_custom_call.1']
    #allocation7 [shape = 's32[1]{0}', space=sflag, size = 0x4, scoped, tag = 'scoped memory for tpu_custom_call.1']
    #allocation8 [shape = 'u8[65536]{0}', space=vmem, size = 0x10000, scoped, tag = 'input window, operand 1, single buffered']
    #allocation9 [shape = 's32[1]{0}', space=sflag, size = 0x4, scoped, tag = 'scoped memory for tpu_custom_call.1']
    #allocation10 [shape = 'u8[4096]{0}', space=vmem, size = 0x1000, scoped, tag = 'output window, operand 0, single buffered']
    %11 = vsyncpa [#allocation6], 0
    %12 = vsyncpa [#allocation9], 0
    %13 = vsyncpa [#allocation7], 0
    // Predicated region
    $region2: #{tpu_custom_call.1} parent=1 // pred_check
      _
    $region3: #{tpu_custom_call.1} parent=1 // pred_check_branch
      %15 = sbr.rel (0) target = $region5
    $region4: #{tpu_custom_call.1} parent=1 // pred_region
      %s17 = ssub.s32 128, 128
      %18 = vsyncadd [#allocation6], %s17
      %s20 = sshll.u32 [#allocation5], 4
      %s21 = int_to_ptr.vmem [resolvable:$true] %s20
      %23 = dma.hbm_to_vmem [thread:$0]  %s0, 128, %s21, [#allocation6]
    $region5: #{tpu_custom_call.1} parent=1 // pred_fallthru
      _
    // Predicated region
    $region6: #{tpu_custom_call.1} parent=1 // pred_check
      _
    $region7: #{tpu_custom_call.1} parent=1 // pred_check_branch
      %25 = sbr.rel (0) target = $region9
    $region8: #{tpu_custom_call.1} parent=1 // pred_region
      %s27 = ssub.s32 2048, 2048
      %28 = vsyncadd [#allocation9], %s27
      %s29 = sshll.u32 [#allocation8], 4
      %s30 = int_to_ptr.vmem [resolvable:$true] %s29
      %35 = dma.hbm_to_vmem [thread:$0]  %s1, 2048, %s30, [#allocation9], 128, 128, 8
    $region9: #{tpu_custom_call.1} parent=1 // pred_fallthru
      _
    // Predicated region
    $region10: #{tpu_custom_call.1} parent=1 // pred_check
      _
    $region11: #{tpu_custom_call.1} parent=1 // pred_check_branch
      %37 = sbr.rel (0) target = $region13
    $region12: #{tpu_custom_call.1} parent=1 // pred_region
      _
    $region13: #{tpu_custom_call.1} parent=1 // pred_fallthru
      _
    // Predicated region
    $region14: #{tpu_custom_call.1} parent=1 // pred_check
      _
    $region15: #{tpu_custom_call.1} parent=1 // pred_check_branch
      %39 = sbr.rel (0) target = $region17
    $region16: #{tpu_custom_call.1} parent=1 // pred_region
      _
    $region17: #{tpu_custom_call.1} parent=1 // pred_fallthru
      _
    // Predicated region
    $region18: #{tpu_custom_call.1} parent=1 // pred_check
      _
    $region19: #{tpu_custom_call.1} parent=1 // pred_check_branch
      %41 = sbr.rel (0) target = $region21
    $region20: #{tpu_custom_call.1} parent=1 // pred_region
      %42 = dma.done [#allocation6], 128
    $region21: #{tpu_custom_call.1} parent=1 // pred_fallthru
      _
    // Predicated region
    $region22: #{tpu_custom_call.1} parent=1 // pred_check
      _
    $region23: #{tpu_custom_call.1} parent=1 // pred_check_branch
      %44 = sbr.rel (0) target = $region25
    $region24: #{tpu_custom_call.1} parent=1 // pred_region
      %45 = dma.done [#allocation9], 2048
    $region25: #{tpu_custom_call.1} parent=1 // pred_fallthru
      _
    %p46 = scmp.eq.s32.totalorder 0, 0
    // Predicated region
    $region26: #{tpu_custom_call.1} parent=1 // pred_check
      %p47 = pneg %p46
    $region27: #{tpu_custom_call.1} parent=1 // pred_check_branch
      %49 = sbr.rel (%p47) target = $region29
    $region28: #{tpu_custom_call.1} parent=1 // pred_region
      %50 = vst [vmem:[#allocation2] sm:$0xff] 0.0
      %51 = vst [vmem:[#allocation3] sm:$0x1] 0.0
    $region29: #{tpu_custom_call.1} parent=1 // pred_fallthru
      _
    %v52 = vld [vmem:[#allocation5] sm:$0xff]
    %v53 = vld [vmem:[#allocation8] sm:$0xff]
    %v54 = vld [vmem:[#allocation8 + $0x8] sm:$0xff]
    %v55 = vld [vmem:[#allocation8 + $0x10] sm:$0xff]
    %v56 = vld [vmem:[#allocation8 + $0x18] sm:$0xff]
    %v57 = vld [vmem:[#allocation8 + $0x20] sm:$0xff]
    %v58 = vld [vmem:[#allocation8 + $0x28] sm:$0xff]
    %v59 = vld [vmem:[#allocation8 + $0x30] sm:$0xff]
    %v60 = vld [vmem:[#allocation8 + $0x38] sm:$0xff]
    %v61 = vld [vmem:[#allocation8 + $0x40] sm:$0xff]
    %v62 = vld [vmem:[#allocation8 + $0x48] sm:$0xff]
    %v63 = vld [vmem:[#allocation8 + $0x50] sm:$0xff]
    %v64 = vld [vmem:[#allocation8 + $0x58] sm:$0xff]
    %v65 = vld [vmem:[#allocation8 + $0x60] sm:$0xff]
    %v66 = vld [vmem:[#allocation8 + $0x68] sm:$0xff]
    %v67 = vld [vmem:[#allocation8 + $0x70] sm:$0xff]
    %v68 = vld [vmem:[#allocation8 + $0x78] sm:$0xff]
    %v69 = vld [vmem:[#allocation2] sm:$0xff]
    %70 = vmatprep.subr.mxu0 0.0
    %71 = vmatpush1.xpose.msra.mxu0 %v53
    %72 = vmatprep.subr.mxu0 0.0
    %73 = vmatpush1.xpose.msra.mxu0 %v54
    %74 = vmatprep.subr.mxu0 0.0
    %75 = vmatpush1.xpose.msra.mxu0 %v55
    %76 = vmatprep.subr.mxu0 0.0
    %77 = vmatpush1.xpose.msra.mxu0 %v56
    %78 = vmatprep.subr.mxu0 0.0
    %79 = vmatpush1.xpose.msra.mxu0 %v57
    %80 = vmatprep.subr.mxu0 0.0
    %81 = vmatpush1.xpose.msra.mxu0 %v58
    %82 = vmatprep.subr.mxu0 0.0
    %83 = vmatpush1.xpose.msra.mxu0 %v59
    %84 = vmatprep.subr.mxu0 0.0
    %85 = vmatpush1.xpose.msra.mxu0 %v60
    %86 = vmatprep.subr.mxu0 0.0
    %87 = vmatpush1.xpose.msra.mxu0 %v61
    %88 = vmatprep.subr.mxu0 0.0
    %89 = vmatpush1.xpose.msra.mxu0 %v62
    %90 = vmatprep.subr.mxu0 0.0
    %91 = vmatpush1.xpose.msra.mxu0 %v63
    %92 = vmatprep.subr.mxu0 0.0
    %93 = vmatpush1.xpose.msra.mxu0 %v64
    %94 = vmatprep.subr.mxu0 0.0
    %95 = vmatpush1.xpose.msra.mxu0 %v65
    %96 = vmatprep.subr.mxu0 0.0
    %97 = vmatpush1.xpose.msra.mxu0 %v66
    %98 = vmatprep.subr.mxu0 0.0
    %99 = vmatpush1.xpose.msra.mxu0 %v67
    %100 = vmatprep.subr.mxu0 0.0
    %101 = vmatpush1.xpose.msra.mxu0 %v68
    %102 = vmatprep.subr.mxu0 0.0
    %103 = vmatpush1.xpose.msra.mxu0 0.0
    %104 = vmatprep.subr.mxu0 0.0
    %105 = vmatpush1.xpose.msra.mxu0 0.0
    %106 = vmatprep.subr.mxu0 0.0
    %107 = vmatpush1.xpose.msra.mxu0 0.0
    %108 = vmatprep.subr.mxu0 0.0
    %109 = vmatpush1.xpose.msra.mxu0 0.0
    %110 = vmatprep.subr.mxu0 0.0
    %111 = vmatpush1.xpose.msra.mxu0 0.0
    %112 = vmatprep.subr.mxu0 0.0
    %113 = vmatpush1.xpose.msra.mxu0 0.0
    %114 = vmatprep.subr.mxu0 0.0
    %115 = vmatpush1.xpose.msra.mxu0 0.0
    %116 = vmatprep.subr.mxu0 0.0
    %117 = vmatpush1.xpose.msra.mxu0 0.0
    %118 = vmatprep.subr.mxu0 0.0
    %119 = vmatpush1.xpose.msra.mxu0 0.0
    %120 = vmatprep.subr.mxu0 0.0
    %121 = vmatpush1.xpose.msra.mxu0 0.0
    %122 = vmatprep.subr.mxu0 0.0
    %123 = vmatpush1.xpose.msra.mxu0 0.0
    %124 = vmatprep.subr.mxu0 0.0
    %125 = vmatpush1.xpose.msra.mxu0 0.0
    %126 = vmatprep.subr.mxu0 0.0
    %127 = vmatpush1.xpose.msra.mxu0 0.0
    %128 = vmatprep.subr.mxu0 0.0
    %129 = vmatpush1.xpose.msra.mxu0 0.0
    %130 = vmatprep.subr.mxu0 0.0
    %131 = vmatpush1.xpose.msra.mxu0 0.0
    %132 = vmatprep.subr.mxu0 0.0
    %133 = vmatpush1.xpose.msra.mxu0 0.0
    %134 = vmatprep.mubr.f32.mxu0 0.0
    %135 = vmatmul.mubr.f32.gmra.mrb[0].mxu0 %v52
    %v136 = vpop.f32.mrb[0].mxu0
    %v137 = vadd.f32 0.0, %v136
    %v138 = vpop.f32.mrb[0].mxu0
    %139 = vdwg.mxu0
    %v140 = vadd.f32 %v69, %v137
    %141 = vst [vmem:[#allocation2] sm:$0xff] %v140
    %v142 = vld [vmem:[#allocation3] sm:$0x1]
    %v143 = vand.u32 2147483647, %v53
    %v144 = vand.u32 2147483647, %v54
    %v145 = vand.u32 2147483647, %v55
    %v146 = vand.u32 2147483647, %v56
    %v147 = vand.u32 2147483647, %v57
    %v148 = vand.u32 2147483647, %v58
    %v149 = vand.u32 2147483647, %v59
    %v150 = vand.u32 2147483647, %v60
    %v151 = vand.u32 2147483647, %v61
    %v152 = vand.u32 2147483647, %v62
    %v153 = vand.u32 2147483647, %v63
    %v154 = vand.u32 2147483647, %v64
    %v155 = vand.u32 2147483647, %v65
    %v156 = vand.u32 2147483647, %v66
    %v157 = vand.u32 2147483647, %v67
    %v158 = vand.u32 2147483647, %v68
    %159 = vmatprep.subr.mxu0 0.0
    %160 = vmatpush1.xpose.msra.mxu0 %v143
    %161 = vmatprep.subr.mxu0 0.0
    %162 = vmatpush1.xpose.msra.mxu0 %v144
    %163 = vmatprep.subr.mxu0 0.0
    %164 = vmatpush1.xpose.msra.mxu0 %v145
    %165 = vmatprep.subr.mxu0 0.0
    %166 = vmatpush1.xpose.msra.mxu0 %v146
    %167 = vmatprep.subr.mxu0 0.0
    %168 = vmatpush1.xpose.msra.mxu0 %v147
    %169 = vmatprep.subr.mxu0 0.0
    %170 = vmatpush1.xpose.msra.mxu0 %v148
    %171 = vmatprep.subr.mxu0 0.0
    %172 = vmatpush1.xpose.msra.mxu0 %v149
    %173 = vmatprep.subr.mxu0 0.0
    %174 = vmatpush1.xpose.msra.mxu0 %v150
    %175 = vmatprep.subr.mxu0 0.0
    %176 = vmatpush1.xpose.msra.mxu0 %v151
    %177 = vmatprep.subr.mxu0 0.0
    %178 = vmatpush1.xpose.msra.mxu0 %v152
    %179 = vmatprep.subr.mxu0 0.0
    %180 = vmatpush1.xpose.msra.mxu0 %v153
    %181 = vmatprep.subr.mxu0 0.0
    %182 = vmatpush1.xpose.msra.mxu0 %v154
    %183 = vmatprep.subr.mxu0 0.0
    %184 = vmatpush1.xpose.msra.mxu0 %v155
    %185 = vmatprep.subr.mxu0 0.0
    %186 = vmatpush1.xpose.msra.mxu0 %v156
    %187 = vmatprep.subr.mxu0 0.0
    %188 = vmatpush1.xpose.msra.mxu0 %v157
    %189 = vmatprep.subr.mxu0 0.0
    %190 = vmatpush1.xpose.msra.mxu0 %v158
    %191 = vmatprep.subr.mxu0 0.0
    %192 = vmatpush1.xpose.msra.mxu0 0.0
    %193 = vmatprep.subr.mxu0 0.0
    %194 = vmatpush1.xpose.msra.mxu0 0.0
    %195 = vmatprep.subr.mxu0 0.0
    %196 = vmatpush1.xpose.msra.mxu0 0.0
    %197 = vmatprep.subr.mxu0 0.0
    %198 = vmatpush1.xpose.msra.mxu0 0.0
    %199 = vmatprep.subr.mxu0 0.0
    %200 = vmatpush1.xpose.msra.mxu0 0.0
    %201 = vmatprep.subr.mxu0 0.0
    %202 = vmatpush1.xpose.msra.mxu0 0.0
    %203 = vmatprep.subr.mxu0 0.0
    %204 = vmatpush1.xpose.msra.mxu0 0.0
    %205 = vmatprep.subr.mxu0 0.0
    %206 = vmatpush1.xpose.msra.mxu0 0.0
    %207 = vmatprep.subr.mxu0 0.0
    %208 = vmatpush1.xpose.msra.mxu0 0.0
    %209 = vmatprep.subr.mxu0 0.0
    %210 = vmatpush1.xpose.msra.mxu0 0.0
    %211 = vmatprep.subr.mxu0 0.0
    %212 = vmatpush1.xpose.msra.mxu0 0.0
    %213 = vmatprep.subr.mxu0 0.0
    %214 = vmatpush1.xpose.msra.mxu0 0.0
    %215 = vmatprep.subr.mxu0 0.0
    %216 = vmatpush1.xpose.msra.mxu0 0.0
    %217 = vmatprep.subr.mxu0 0.0
    %218 = vmatpush1.xpose.msra.mxu0 0.0
    %219 = vmatprep.subr.mxu0 0.0
    %220 = vmatpush1.xpose.msra.mxu0 0.0
    %221 = vmatprep.subr.mxu0 0.0
    %222 = vmatpush1.xpose.msra.mxu0 0.0
    %223 = vmatprep.mubr.f32.mxu0 0.0
    %224 = vmatmul.mubr.f32.gmra.mrb[0].mxu0 1.0
    %v225 = vpop.f32.mrb[0].mxu0
    %v226 = vadd.f32 0.0, %v225
    %v227 = vpop.f32.mrb[0].mxu0
    %228 = vdwg.mxu0
    %v229 = vadd.f32 %v142, %v226
    %230 = vst [vmem:[#allocation3] sm:$0x1] %v229
    // Predicated region
    $region30: #{tpu_custom_call.1} parent=1 // pred_check
      %p231 = pneg %p46
    $region31: #{tpu_custom_call.1} parent=1 // pred_check_branch
      %233 = sbr.rel (%p231) target = $region33
    $region32: #{tpu_custom_call.1} parent=1 // pred_region
      %v234 = vld [vmem:[#allocation4] sm:$0x1]
      %vm235 = vcmp.gt.f32.partialorder %v234, 20.0
      %v236 = vmul.f32 %v234, 1.442695
      %v237 = vpow.pop %v236
      %v238 = vadd.f32 %v237, 1.0
      %v239 = vlog2.pop %v238
      %v240 = vmul.f32 %v239, 0.6931472
      %v241 = vsel %vm235, %v234, %v240
      %v242 = vld [vmem:[#allocation3] sm:$0x1]
      %v243 = vmax.f32 %v242, 1e-30
      %245 = vset.pattern.permute.xlu0 0
      %246 = vperm.xlu0 %245, %v241
      %v247 = vpop.permute.xlu0 %246
      %v249 = vlaneseq
      %v250 = vshrl.u32 %v249, 7
      %v251 = vsub.s32 0, %v250
      %v252 = vrot.slane %v247, %v251
      %v253 = vrcp.pop %v243
      %v254 = vmul.f32 %v252, %v253
      %v255 = vmin.f32 %v254, 1.0
      %v256 = vld [vmem:[#allocation2] sm:$0xff]
      %v258 = vlaneseq
      %v259 = vshrl.u32 %v258, 7
      %v260 = vsub.s32 0, %v259
      %v261 = vrot.slane %v255, %v260
      %v263 = vmul.f32 %v256, %v261
      %v264 = vld [vmem:[%s2] sm:$0x1]
      %v266 = vlaneseq
      %v267 = vshrl.u32 %v266, 7
      %v268 = vsub.s32 0, %v267
      %v269 = vrot.slane %v264, %v268
      %v271 = vadd.f32 %v263, %v269
      %272 = vst [vmem:[#allocation10] sm:$0xff] %v271
    $region33: #{tpu_custom_call.1} parent=1 // pred_fallthru
      _
    // Predicated region
    $region34: #{tpu_custom_call.1} parent=1 // pred_check
      _
    $region35: #{tpu_custom_call.1} parent=1 // pred_check_branch
      %274 = sbr.rel (0) target = $region37
    $region36: #{tpu_custom_call.1} parent=1 // pred_region
      %s276 = ssub.s32 128, 128
      %277 = vsyncadd [#allocation7], %s276
      %s279 = sshll.u32 [#allocation10], 4
      %s280 = int_to_ptr.vmem [resolvable:$true] %s279
      %282 = dma.vmem_to_hbm [thread:$0]  %s280, 128, %s4, [#allocation7]
    $region37: #{tpu_custom_call.1} parent=1 // pred_fallthru
      _
    // Predicated region
    $region38: #{tpu_custom_call.1} parent=1 // pred_check
      _
    $region39: #{tpu_custom_call.1} parent=1 // pred_check_branch
      %284 = sbr.rel (0) target = $region41
    $region40: #{tpu_custom_call.1} parent=1 // pred_region
      %285 = dma.done [#allocation7], 128
    $region41: #{tpu_custom_call.1} parent=1 // pred_fallthru
      _
    %286 = vsyncpa [#allocation6], 1
    %287 = vsyncpa [#allocation9], 1
    %288 = vsyncpa [#allocation7], 1

</llo_original>
